<compile_context>
chip_gen: v7x
topology: tpu7x:2x2x1
jax: 0.10.0
libtpu: 0.0.40
codegen_flags: <defaults>
</compile_context>

<pallas_src>
import jax
import jax.numpy as jnp
from jax import lax
from jax.experimental import pallas as pl
from jax.experimental.pallas import tpu as pltpu

_EPS = 1e-5  # matches the module's self.eps


def _layernorm_kernel(x_ref, scale_ref, shift_ref, o_ref):
    # x_ref/o_ref: (tm, E); scale_ref/shift_ref: (1, E) f32.
    x = x_ref[...].astype(jnp.float32)
    e = x.shape[-1]

    # One-pass row moments on the (otherwise idle) MXU: row-sums of x and x*x.
    ones = jnp.ones((e, 1), dtype=jnp.float32)
    s = jnp.dot(x, ones, preferred_element_type=jnp.float32)        # (tm, 1)
    sq = jnp.dot(x * x, ones, preferred_element_type=jnp.float32)   # (tm, 1)

    inv_e = jnp.float32(1.0 / e)
    mean = s * inv_e
    # torch.var(dim=-1) default is the unbiased estimator -> divide by E-1.
    var = (sq - s * mean) * jnp.float32(1.0 / (e - 1))
    var = jnp.maximum(var, jnp.float32(0.0))            # guard fp cancellation
    inv_std = lax.rsqrt(var + jnp.float32(_EPS))        # EUP slot, ~free

    y = (x - mean) * inv_std * scale_ref[...] + shift_ref[...]
    o_ref[...] = y.astype(o_ref.dtype)


def _round_up(x, m):
    return ((x + m - 1) // m) * m


def layer_norm(x, scale, shift, *, target_tile_bytes=4 * 1024 * 1024):
    """LayerNormalization forward. x: (..., E); scale/shift: (E,)."""
    orig_shape = x.shape
    E = orig_shape[-1]
    M = 1
    for d in orig_shape[:-1]:
        M *= d
    x2 = x.reshape(M, E)
    itemsize = jnp.dtype(x2.dtype).itemsize

    # ---- row-tile selection (no wrapper padding; Pallas masks the last block)
    # Target ~4 MiB of f32-equivalent per tile so per-step overhead amortizes.
    tm = max(8, (target_tile_bytes // (E * 4)) // 8 * 8)
    if M >= 8:
        # >=2 blocks so the "parallel" row axis can span both v7x TensorCores;
        # never larger than the (sublane-rounded) total row count.
        tm = min(tm, _round_up(pl.cdiv(M, 2), 8), _round_up(M, 8))
    else:
        tm = M  # tiny input: single block equal to the full array dims
    grid_m = pl.cdiv(M, tm)

    # ---- VMEM budget: 3 input buffers + 2 output buffers + f32 temporaries.
    in_block = tm * E * itemsize
    out_block = tm * E * itemsize
    f32_block = tm * E * 4
    vmem_need = 3 * in_block + 2 * out_block + 4 * f32_block + (2 << 20)
    vmem_limit = int(min(max(vmem_need, 32 << 20), 48 << 20))  # v7x: 64 MiB phys

    scale2 = scale.reshape(1, E).astype(jnp.float32)
    shift2 = shift.reshape(1, E).astype(jnp.float32)

    # Deeper input buffering only helps (and is only exercised) on long grids.
    if grid_m >= 3:
        x_spec = pl.BlockSpec((tm, E), lambda i: (i, 0),
                              pipeline_mode=pl.Buffered(3))
    else:
        x_spec = pl.BlockSpec((tm, E), lambda i: (i, 0))

    cost = pl.CostEstimate(
        flops=8 * M * E,
        transcendentals=M,
        bytes_accessed=2 * M * E * itemsize + 2 * E * 4,
    )

    out = pl.pallas_call(
        _layernorm_kernel,
        out_shape=jax.ShapeDtypeStruct((M, E), x.dtype),
        grid_spec=pltpu.PrefetchScalarGridSpec(
            num_scalar_prefetch=0,
            grid=(grid_m,),
            in_specs=[
                x_spec,                                     # x row tile
                pl.BlockSpec((1, E), lambda i: (0, 0)),     # scale (invariant)
                pl.BlockSpec((1, E), lambda i: (0, 0)),     # shift (invariant)
            ],
            out_specs=pl.BlockSpec((tm, E), lambda i: (i, 0)),
        ),
        compiler_params=pltpu.CompilerParams(
            dimension_semantics=("parallel",),
            vmem_limit_bytes=vmem_limit,
        ),
        cost_estimate=cost,
    )(x2, scale2, shift2)

    return out.reshape(orig_shape)


def _reference(x, scale, shift):
    xf = x.astype(jnp.float32)
    mean = xf.mean(axis=-1, keepdims=True)
    var = jnp.var(xf, axis=-1, keepdims=True, ddof=1)  # unbiased, like torch.var
    y = (xf - mean) / jnp.sqrt(var + _EPS) * scale + shift
    return y.astype(x.dtype)


if __name__ == "__main__":
    key = jax.random.PRNGKey(0)
    kx, ks, kb, kx2 = jax.random.split(key, 4)

    E = 128
    # Module initializes scale=1, shift=0; perturb so the affine path is exercised.
    scale = 1.0 + 0.1 * jax.random.normal(ks, (E,), dtype=jnp.float32)
    shift = 0.1 * jax.random.normal(kb, (E,), dtype=jnp.float32)

    # Case 1: lane-dense, tile-aligned rows (batch=2, seq=8, embedding_dim=128).
    x = jax.random.normal(kx, (2, 8, E), dtype=jnp.float32)
    y = jax.block_until_ready(layer_norm(x, scale, shift))
    y_ref = _reference(x, scale, shift)
    assert jnp.allclose(y, y_ref, atol=1e-4, rtol=1e-4), "mismatch (aligned case)"

    # Case 2: row count NOT a tile multiple -> exercises the unpadded partial
    # last block (masked writeback, no wrapper pad/slice round-trips).
    x_u = 3.0 + jax.random.normal(kx2, (3, 5, E), dtype=jnp.float32)
    y_u = jax.block_until_ready(layer_norm(x_u, scale, shift))
    y_u_ref = _reference(x_u, scale, shift)
    assert jnp.allclose(y_u, y_u_ref, atol=1e-4, rtol=1e-4), "mismatch (partial block)"

    print("KERNEL_OK")
</pallas_src>

<mosaic_0001>
module attributes {stable_mosaic.version = 11 : i64} {
  func.func @_layernorm_kernel(%arg0: i32, %arg1: memref<8x128xf32, #tpu.memory_space<vmem>>, %arg2: memref<1x128xf32, #tpu.memory_space<vmem>>, %arg3: memref<1x128xf32, #tpu.memory_space<vmem>>, %arg4: memref<8x128xf32, #tpu.memory_space<vmem>>) attributes {dimension_semantics = [#tpu.dimension_semantics<parallel>], iteration_bounds = array<i64: 2>, scalar_prefetch = 0 : i64, scratch_operands = 0 : i64, tpu.core_type = #tpu.core_type<tc>, window_params = [{transform_indices = @transform_0, window_bounds = array<i64: 8, 128>}, {pipeline_mode = #tpu.pipeline_mode<synchronous>, transform_indices = @transform_1, window_bounds = array<i64: 1, 128>}, {pipeline_mode = #tpu.pipeline_mode<synchronous>, transform_indices = @transform_2, window_bounds = array<i64: 1, 128>}, {transform_indices = @transform_3, window_bounds = array<i64: 8, 128>}]} {
    %c0 = arith.constant 0 : index
    %c0_0 = arith.constant 0 : index
    %0 = vector.load %arg1[%c0, %c0_0] : memref<8x128xf32, #tpu.memory_space<vmem>>, vector<8x128xf32>
    %cst = arith.constant 1.000000e+00 : f32
    %1 = vector.broadcast %cst : f32 to vector<128x1xf32>
    %cst_1 = arith.constant dense<0.000000e+00> : vector<8x1xf32>
    %2 = tpu.matmul %0, %1, %cst_1 {dimension_numbers = #tpu.dot_dimension_numbers<[1], [0], [0], [1], [0, 0, 1, 1], [], []>} : vector<8x128xf32>, vector<128x1xf32>, vector<8x1xf32> -> vector<8x1xf32>
    %3 = arith.mulf %0, %0 : vector<8x128xf32>
    %cst_2 = arith.constant dense<0.000000e+00> : vector<8x1xf32>
    %4 = tpu.matmul %3, %1, %cst_2 {dimension_numbers = #tpu.dot_dimension_numbers<[1], [0], [0], [1], [0, 0, 1, 1], [], []>} : vector<8x128xf32>, vector<128x1xf32>, vector<8x1xf32> -> vector<8x1xf32>
    %cst_3 = arith.constant 7.812500e-03 : f32
    %5 = vector.broadcast %cst_3 : f32 to vector<8x1xf32>
    %6 = arith.mulf %2, %5 : vector<8x1xf32>
    %7 = arith.mulf %2, %6 : vector<8x1xf32>
    %8 = arith.subf %4, %7 : vector<8x1xf32>
    %cst_4 = arith.constant 0.00787401571 : f32
    %9 = vector.broadcast %cst_4 : f32 to vector<8x1xf32>
    %10 = arith.mulf %8, %9 : vector<8x1xf32>
    %cst_5 = arith.constant 0.000000e+00 : f32
    %11 = vector.broadcast %cst_5 : f32 to vector<8x1xf32>
    %12 = arith.maximumf %10, %11 : vector<8x1xf32>
    %cst_6 = arith.constant 9.99999974E-6 : f32
    %13 = vector.broadcast %cst_6 : f32 to vector<8x1xf32>
    %14 = arith.addf %12, %13 : vector<8x1xf32>
    %15 = math.rsqrt %14 : vector<8x1xf32>
    %16 = vector.broadcast %6 : vector<8x1xf32> to vector<8x128xf32>
    %17 = arith.subf %0, %16 : vector<8x128xf32>
    %18 = vector.broadcast %15 : vector<8x1xf32> to vector<8x128xf32>
    %19 = arith.mulf %17, %18 : vector<8x128xf32>
    %c0_7 = arith.constant 0 : index
    %c0_8 = arith.constant 0 : index
    %20 = vector.load %arg2[%c0_7, %c0_8] : memref<1x128xf32, #tpu.memory_space<vmem>>, vector<1x128xf32>
    %21 = vector.broadcast %20 : vector<1x128xf32> to vector<8x128xf32>
    %22 = arith.mulf %19, %21 : vector<8x128xf32>
    %c0_9 = arith.constant 0 : index
    %c0_10 = arith.constant 0 : index
    %23 = vector.load %arg3[%c0_9, %c0_10] : memref<1x128xf32, #tpu.memory_space<vmem>>, vector<1x128xf32>
    %24 = vector.broadcast %23 : vector<1x128xf32> to vector<8x128xf32>
    %25 = arith.addf %22, %24 : vector<8x128xf32>
    %c0_11 = arith.constant 0 : index
    %c0_12 = arith.constant 0 : index
    %26 = vector.load %arg4[%c0_11, %c0_12] : memref<8x128xf32, #tpu.memory_space<vmem>>, vector<8x128xf32>
    tpu.vector_store %arg4[%c0_11, %c0_12], %25 {strides = array<i32>} : memref<8x128xf32, #tpu.memory_space<vmem>>, vector<8x128xf32>,
    return
  }
  func.func @transform_0(%arg0: i32) -> (i32, i32) {
    %c0_i32 = arith.constant 0 : i32
    %c0_i32_0 = arith.constant 0 : i32
    return %arg0, %c0_i32 : i32, i32
  }
  func.func @transform_1(%arg0: i32) -> (i32, i32) {
    %c0_i32 = arith.constant 0 : i32
    %c0_i32_0 = arith.constant 0 : i32
    %c0_i32_1 = arith.constant 0 : i32
    return %c0_i32, %c0_i32_0 : i32, i32
  }
  func.func @transform_2(%arg0: i32) -> (i32, i32) {
    %c0_i32 = arith.constant 0 : i32
    %c0_i32_0 = arith.constant 0 : i32
    %c0_i32_1 = arith.constant 0 : i32
    return %c0_i32, %c0_i32_0 : i32, i32
  }
  func.func @transform_3(%arg0: i32) -> (i32, i32) {
    %c0_i32 = arith.constant 0 : i32
    %c0_i32_0 = arith.constant 0 : i32
    return %arg0, %c0_i32 : i32, i32
  }
}

</mosaic_0001>

<llo_original>
// kernel: tpu_custom_call.1
$region0: #{tpu_custom_call.1}
  #allocation0 [shape = 'u32[]', space=smem, size = 0x4, offset = 0x4, fixed_abs, tag = 'smem constant byte address 0x4 - core index']
  #allocation1 [shape = 'u32[144,128]{1,0:T(1,128)}', space=vmem, size = 0x12000, scoped, tag = 'internal scratch']
  %s0 = inlined_call_operand.hbm [shape: f32[16,128], index: 0, kind: input, shape index: {}]
  %s1 = inlined_call_operand.vmem [shape: f32[1,128], index: 1, kind: input, shape index: {}]
  %s2 = inlined_call_operand.vmem [shape: f32[1,128], index: 2, kind: input, shape index: {}]
  %s3 = inlined_call_operand.hbm [shape: f32[16,128], index: 3, kind: output, shape index: {}]
  %s4 = sld [smem:[#allocation0]]
  $region49: #{tpu_custom_call.1} parent=0
    _
  %s6 = ssub.s32 1, %s4
  %s7 = scalar_select 0, %s6, %s4
  $region1: #{tpu_custom_call.1} parent=0
    #allocation2 [shape = 'u8[8192]{0}', space=vmem, size = 0x2000, scoped, tag = 'input window, operand 0']
    #allocation3 [shape = 's32[2]{0}', space=sflag, size = 0x8, scoped, tag = 'scoped memory for tpu_custom_call.1']
    #allocation4 [shape = 's32[2]{0}', space=sflag, size = 0x8, scoped, tag = 'scoped memory for tpu_custom_call.1']
    #allocation5 [shape = 'u8[8192]{0}', space=vmem, size = 0x2000, scoped, tag = 'output window, operand 0']
    %8 = vsyncpa [#allocation3], 0
    %s9 = scalar_lea.sflag [#allocation3], 1
    %10 = vsyncpa %s9, 0
    %11 = vsyncpa [#allocation4], 0
    %s12 = scalar_lea.sflag [#allocation4], 1
    %13 = vsyncpa %s12, 0
    loop: start=0, step=1, limit=4
    $region2: #{tpu_custom_call.1} parent=1 // loop_pre_header
      _
    $region3: #{tpu_custom_call.1} parent=1 // loop_header
      %s15 = sphi 0, %s19
      %p16 = scmp.ge.s32.totalorder %s15, 4
      %s25 = sphi 0, %s27
      %s28 = sphi 0, %s25
      %s29 = sphi 0, %s28
      %s45 = sphi 0, %s29
      %s49 = sphi 0, %s49
      %s51 = sphi 0, %s49
      %s52 = sphi 0, %s51
      %s66 = sphi 0, %s52
      %s70 = sphi 0, %s70
      %s72 = sphi 0, %s70
      %s73 = sphi 0, %s72
      %s87 = sphi 0, %s73
      %s93 = sphi 0, %s95
      %s96 = sphi 0, %s93
      %s97 = sphi 0, %s96
      %s113 = sphi 0, %s97
    $region4: #{tpu_custom_call.1} parent=1 // loop_header_branch
      %18 = sbr.rel (%p16) target = $region8
    $region5: #{tpu_custom_call.1} parent=1 // loop_body
      %s20 = ssub.s32 %s15, 1
      %s21 = ssub.s32 %s15, 2
      %s22 = sadd.s32 %s15, 1
      %s23 = ssub.s32 %s15, %s22
      %p24 = scmp.eq.s32.totalorder %s23, 0
      %s26 = sadd.s32 %s25, 1
      %s27 = scalar_select %p24, %s25, %s26
      %p30 = pneg %p24
      %p31 = scmp.eq.s32.totalorder %s15, 1
      %p32 = por %p30, %p31
      %p33 = scmp.ne.s32.totalorder %s25, %s28
      %p34 = scmp.eq.s32.totalorder %s15, 0
      %p35 = por %p33, %p34
      %p36 = scmp.ne.s32.totalorder %s25, %s28
      %p37 = scmp.eq.s32.totalorder %s20, 1
      %p38 = por %p36, %p37
      %p39 = scmp.ne.s32.totalorder %s28, %s29
      %p40 = scmp.eq.s32.totalorder %s20, 0
      %p41 = por %p39, %p40
      %p42 = scmp.ne.s32.totalorder %s28, %s29
      %p43 = scmp.eq.s32.totalorder %s21, 1
      %p44 = por %p42, %p43
      %p46 = scmp.ne.s32.totalorder %s29, %s45
      %p47 = scmp.eq.s32.totalorder %s21, 0
      %p48 = por %p46, %p47
      %s50 = sadd.s32 %s49, 1
      %p53 = scmp.eq.s32.totalorder %s15, 1
      %p54 = scmp.ne.s32.totalorder %s49, %s51
      %p55 = scmp.eq.s32.totalorder %s15, 0
      %p56 = por %p54, %p55
      %p57 = scmp.ne.s32.totalorder %s49, %s51
      %p58 = scmp.eq.s32.totalorder %s20, 1
      %p59 = por %p57, %p58
      %p60 = scmp.ne.s32.totalorder %s51, %s52
      %p61 = scmp.eq.s32.totalorder %s20, 0
      %p62 = por %p60, %p61
      %p63 = scmp.ne.s32.totalorder %s51, %s52
      %p64 = scmp.eq.s32.totalorder %s21, 1
      %p65 = por %p63, %p64
      %p67 = scmp.ne.s32.totalorder %s52, %s66
      %p68 = scmp.eq.s32.totalorder %s21, 0
      %p69 = por %p67, %p68
      %s71 = sadd.s32 %s70, 1
      %p74 = scmp.eq.s32.totalorder %s15, 1
      %p75 = scmp.ne.s32.totalorder %s70, %s72
      %p76 = scmp.eq.s32.totalorder %s15, 0
      %p77 = por %p75, %p76
      %p78 = scmp.ne.s32.totalorder %s70, %s72
      %p79 = scmp.eq.s32.totalorder %s20, 1
      %p80 = por %p78, %p79
      %p81 = scmp.ne.s32.totalorder %s72, %s73
      %p82 = scmp.eq.s32.totalorder %s20, 0
      %p83 = por %p81, %p82
      %p84 = scmp.ne.s32.totalorder %s72, %s73
      %p85 = scmp.eq.s32.totalorder %s21, 1
      %p86 = por %p84, %p85
      %p88 = scmp.ne.s32.totalorder %s73, %s87
      %p89 = scmp.eq.s32.totalorder %s21, 0
      %p90 = por %p88, %p89
      %s91 = ssub.s32 %s15, %s22
      %p92 = scmp.eq.s32.totalorder %s91, 0
      %s94 = sadd.s32 %s93, 1
      %s95 = scalar_select %p92, %s93, %s94
      %p98 = pneg %p92
      %p99 = scmp.eq.s32.totalorder %s15, 1
      %p100 = por %p98, %p99
      %p101 = scmp.ne.s32.totalorder %s93, %s96
      %p102 = scmp.eq.s32.totalorder %s15, 0
      %p103 = por %p101, %p102
      %p104 = scmp.ne.s32.totalorder %s93, %s96
      %p105 = scmp.eq.s32.totalorder %s20, 1
      %p106 = por %p104, %p105
      %p107 = scmp.ne.s32.totalorder %s96, %s97
      %p108 = scmp.eq.s32.totalorder %s20, 0
      %p109 = por %p107, %p108
      %p110 = scmp.ne.s32.totalorder %s96, %s97
      %p111 = scmp.eq.s32.totalorder %s21, 1
      %p112 = por %p110, %p111
      %p114 = scmp.ne.s32.totalorder %s97, %s113
      %p115 = scmp.eq.s32.totalorder %s21, 0
      %p116 = por %p114, %p115
      %p117 = scmp.le.s32.totalorder 1, %s15
      %p118 = scmp.lt.s32.totalorder %s15, 3
      %p119 = pnand %p117, %p118
      %p120 = pneg %p119
      // Predicated region
      $region9: #{tpu_custom_call.1} parent=5 // pred_check
        _
      $region10: #{tpu_custom_call.1} parent=5 // pred_check_branch
        %122 = sbr.rel (%p119) target = $region12
      $region11: #{tpu_custom_call.1} parent=5 // pred_region
        %s123 = ssub.s32 %s15, 1
        // Predicated region
        $region13: #{tpu_custom_call.1} parent=11 // pred_check
          %p124 = pneg %p62
        $region14: #{tpu_custom_call.1} parent=11 // pred_check_branch
          %126 = sbr.rel (%p124) target = $region16
        $region15: #{tpu_custom_call.1} parent=11 // pred_region
          _
        $region16: #{tpu_custom_call.1} parent=11 // pred_fallthru
          _
        // Predicated region
        $region17: #{tpu_custom_call.1} parent=11 // pred_check
          %p127 = pneg %p83
        $region18: #{tpu_custom_call.1} parent=11 // pred_check_branch
          %129 = sbr.rel (%p127) target = $region20
        $region19: #{tpu_custom_call.1} parent=11 // pred_region
          _
        $region20: #{tpu_custom_call.1} parent=11 // pred_fallthru
          _
      $region12: #{tpu_custom_call.1} parent=5 // pred_fallthru
        _
      %p130 = scmp.lt.s32.totalorder %s15, 2
      // Predicated region
      $region21: #{tpu_custom_call.1} parent=5 // pred_check
        %p131 = pneg %p130
      $region22: #{tpu_custom_call.1} parent=5 // pred_check_branch
        %133 = sbr.rel (%p131) target = $region24
      $region23: #{tpu_custom_call.1} parent=5 // pred_region
        // Predicated region
        $region25: #{tpu_custom_call.1} parent=23 // pred_check
          %p134 = pneg %p35
        $region26: #{tpu_custom_call.1} parent=23 // pred_check_branch
          %136 = sbr.rel (%p134) target = $region28
        $region27: #{tpu_custom_call.1} parent=23 // pred_region
          %s137 = sand.u32 %s25, 1
          %s138 = scalar_lea.sflag [#allocation3], %s137
          %s139 = sand.u32 %s25, 1
          %s140 = smul.addr %s139, 8
          %s141 = scalar_lea.vmem [#allocation2], %s140
          %s143 = ssub.s32 128, 128
          %144 = vsyncadd %s138, %s143
          %s145 = smul.addr %s15, 128
          %s146 = scalar_lea.hbm %s0, %s145
          %s148 = sshll.u32 %s141, 4
          %s149 = int_to_ptr.vmem [resolvable:$true] %s148
          %151 = dma.hbm_to_vmem [thread:$0]  %s146, 128, %s149, %s138
        $region28: #{tpu_custom_call.1} parent=23 // pred_fallthru
          _
      $region24: #{tpu_custom_call.1} parent=5 // pred_fallthru
        _
      %p152 = scmp.le.s32.totalorder 1, %s15
      %p153 = scmp.lt.s32.totalorder %s15, 3
      %p154 = pnand %p152, %p153
      %p155 = pneg %p154
      // Predicated region
      $region29: #{tpu_custom_call.1} parent=5 // pred_check
        _
      $region30: #{tpu_custom_call.1} parent=5 // pred_check_branch
        %157 = sbr.rel (%p154) target = $region32
      $region31: #{tpu_custom_call.1} parent=5 // pred_region
        %s158 = ssub.s32 %s15, 1
        %s159 = sand.u32 %s28, 1
        %s160 = scalar_lea.sflag [#allocation3], %s159
        %s161 = sand.u32 %s28, 1
        %s162 = smul.addr %s161, 8
        %s163 = scalar_lea.vmem [#allocation2], %s162
        // Predicated region
        $region33: #{tpu_custom_call.1} parent=31 // pred_check
          %p164 = pneg %p41
        $region34: #{tpu_custom_call.1} parent=31 // pred_check_branch
          %166 = sbr.rel (%p164) target = $region36
        $region35: #{tpu_custom_call.1} parent=31 // pred_region
          %167 = dma.done %s160, 128
        $region36: #{tpu_custom_call.1} parent=31 // pred_fallthru
          _
        %s168 = sand.u32 %s28, 1
        %s169 = scalar_lea.sflag [#allocation3], %s168
        %s170 = sand.u32 %s28, 1
        %s171 = smul.addr %s170, 8
        %s172 = scalar_lea.vmem [#allocation2], %s171
        %p173 = pneg %p41
        %p174 = pneg %p38
        %p175 = pneg %p62
        %p176 = pneg %p59
        %p177 = pneg %p83
        %p178 = pneg %p80
        %p179 = pneg %p109
        %p180 = pneg %p106
        %s181 = sand.u32 %s96, 1
        %s182 = scalar_lea.sflag [#allocation4], %s181
        %s183 = sand.u32 %s96, 1
        %s184 = smul.addr %s183, 8
        %s185 = scalar_lea.vmem [#allocation5], %s184
        %v186 = vld [vmem:[%s163] sm:$0xff]
        %187 = vmatprep.subr.mxu0 0.0
        %188 = vmatpush1.msra.mxu0 1.0
        %189 = vmatprep.subr.mxu0 0.0
        %190 = vmatpush1.msra.mxu0 1.0
        %191 = vmatprep.subr.mxu0 0.0
        %192 = vmatpush1.msra.mxu0 1.0
        %193 = vmatprep.subr.mxu0 0.0
        %194 = vmatpush1.msra.mxu0 1.0
        %195 = vmatprep.subr.mxu0 0.0
        %196 = vmatpush1.msra.mxu0 1.0
        %197 = vmatprep.subr.mxu0 0.0
        %198 = vmatpush1.msra.mxu0 1.0
        %199 = vmatprep.subr.mxu0 0.0
        %200 = vmatpush1.msra.mxu0 1.0
        %201 = vmatprep.subr.mxu0 0.0
        %202 = vmatpush1.msra.mxu0 1.0
        %203 = vmatprep.subr.mxu0 0.0
        %204 = vmatpush1.msra.mxu0 1.0
        %205 = vmatprep.subr.mxu0 0.0
        %206 = vmatpush1.msra.mxu0 1.0
        %207 = vmatprep.subr.mxu0 0.0
        %208 = vmatpush1.msra.mxu0 1.0
        %209 = vmatprep.subr.mxu0 0.0
        %210 = vmatpush1.msra.mxu0 1.0
        %211 = vmatprep.subr.mxu0 0.0
        %212 = vmatpush1.msra.mxu0 1.0
        %213 = vmatprep.subr.mxu0 0.0
        %214 = vmatpush1.msra.mxu0 1.0
        %215 = vmatprep.subr.mxu0 0.0
        %216 = vmatpush1.msra.mxu0 1.0
        %217 = vmatprep.subr.mxu0 0.0
        %218 = vmatpush1.msra.mxu0 1.0
        %219 = vmatprep.subr.mxu0 0.0
        %220 = vmatpush1.msra.mxu0 0.0
        %221 = vmatprep.subr.mxu0 0.0
        %222 = vmatpush1.msra.mxu0 0.0
        %223 = vmatprep.subr.mxu0 0.0
        %224 = vmatpush1.msra.mxu0 0.0
        %225 = vmatprep.subr.mxu0 0.0
        %226 = vmatpush1.msra.mxu0 0.0
        %227 = vmatprep.subr.mxu0 0.0
        %228 = vmatpush1.msra.mxu0 0.0
        %229 = vmatprep.subr.mxu0 0.0
        %230 = vmatpush1.msra.mxu0 0.0
        %231 = vmatprep.subr.mxu0 0.0
        %232 = vmatpush1.msra.mxu0 0.0
        %233 = vmatprep.subr.mxu0 0.0
        %234 = vmatpush1.msra.mxu0 0.0
        %235 = vmatprep.subr.mxu0 0.0
        %236 = vmatpush1.msra.mxu0 0.0
        %237 = vmatprep.subr.mxu0 0.0
        %238 = vmatpush1.msra.mxu0 0.0
        %239 = vmatprep.subr.mxu0 0.0
        %240 = vmatpush1.msra.mxu0 0.0
        %241 = vmatprep.subr.mxu0 0.0
        %242 = vmatpush1.msra.mxu0 0.0
        %243 = vmatprep.subr.mxu0 0.0
        %244 = vmatpush1.msra.mxu0 0.0
        %245 = vmatprep.subr.mxu0 0.0
        %246 = vmatpush1.msra.mxu0 0.0
        %247 = vmatprep.subr.mxu0 0.0
        %248 = vmatpush1.msra.mxu0 0.0
        %249 = vmatprep.subr.mxu0 0.0
        %250 = vmatpush1.msra.mxu0 0.0
        %251 = vmatprep.mubr.f32.mxu0 0.0
        %252 = vmatmul.mubr.f32.gmra.mrb[0].mxu0 %v186
        %v253 = vpop.f32.mrb[0].mxu0
        %v254 = vadd.f32 0.0, %v253
        %v255 = vpop.f32.mrb[0].mxu0
        %256 = vdwg.mxu0
        %v257 = vmul.f32 %v186, %v186
        %258 = vmatprep.subr.mxu0 0.0
        %259 = vmatpush1.msra.mxu0 1.0
        %260 = vmatprep.subr.mxu0 0.0
        %261 = vmatpush1.msra.mxu0 1.0
        %262 = vmatprep.subr.mxu0 0.0
        %263 = vmatpush1.msra.mxu0 1.0
        %264 = vmatprep.subr.mxu0 0.0
        %265 = vmatpush1.msra.mxu0 1.0
        %266 = vmatprep.subr.mxu0 0.0
        %267 = vmatpush1.msra.mxu0 1.0
        %268 = vmatprep.subr.mxu0 0.0
        %269 = vmatpush1.msra.mxu0 1.0
        %270 = vmatprep.subr.mxu0 0.0
        %271 = vmatpush1.msra.mxu0 1.0
        %272 = vmatprep.subr.mxu0 0.0
        %273 = vmatpush1.msra.mxu0 1.0
        %274 = vmatprep.subr.mxu0 0.0
        %275 = vmatpush1.msra.mxu0 1.0
        %276 = vmatprep.subr.mxu0 0.0
        %277 = vmatpush1.msra.mxu0 1.0
        %278 = vmatprep.subr.mxu0 0.0
        %279 = vmatpush1.msra.mxu0 1.0
        %280 = vmatprep.subr.mxu0 0.0
        %281 = vmatpush1.msra.mxu0 1.0
        %282 = vmatprep.subr.mxu0 0.0
        %283 = vmatpush1.msra.mxu0 1.0
        %284 = vmatprep.subr.mxu0 0.0
        %285 = vmatpush1.msra.mxu0 1.0
        %286 = vmatprep.subr.mxu0 0.0
        %287 = vmatpush1.msra.mxu0 1.0
        %288 = vmatprep.subr.mxu0 0.0
        %289 = vmatpush1.msra.mxu0 1.0
        %290 = vmatprep.subr.mxu0 0.0
        %291 = vmatpush1.msra.mxu0 0.0
        %292 = vmatprep.subr.mxu0 0.0
        %293 = vmatpush1.msra.mxu0 0.0
        %294 = vmatprep.subr.mxu0 0.0
        %295 = vmatpush1.msra.mxu0 0.0
        %296 = vmatprep.subr.mxu0 0.0
        %297 = vmatpush1.msra.mxu0 0.0
        %298 = vmatprep.subr.mxu0 0.0
        %299 = vmatpush1.msra.mxu0 0.0
        %300 = vmatprep.subr.mxu0 0.0
        %301 = vmatpush1.msra.mxu0 0.0
        %302 = vmatprep.subr.mxu0 0.0
        %303 = vmatpush1.msra.mxu0 0.0
        %304 = vmatprep.subr.mxu0 0.0
        %305 = vmatpush1.msra.mxu0 0.0
        %306 = vmatprep.subr.mxu0 0.0
        %307 = vmatpush1.msra.mxu0 0.0
        %308 = vmatprep.subr.mxu0 0.0
        %309 = vmatpush1.msra.mxu0 0.0
        %310 = vmatprep.subr.mxu0 0.0
        %311 = vmatpush1.msra.mxu0 0.0
        %312 = vmatprep.subr.mxu0 0.0
        %313 = vmatpush1.msra.mxu0 0.0
        %314 = vmatprep.subr.mxu0 0.0
        %315 = vmatpush1.msra.mxu0 0.0
        %316 = vmatprep.subr.mxu0 0.0
        %317 = vmatpush1.msra.mxu0 0.0
        %318 = vmatprep.subr.mxu0 0.0
        %319 = vmatpush1.msra.mxu0 0.0
        %320 = vmatprep.subr.mxu0 0.0
        %321 = vmatpush1.msra.mxu0 0.0
        %322 = vmatprep.mubr.f32.mxu0 0.0
        %323 = vmatmul.mubr.f32.gmra.mrb[0].mxu0 %v257
        %v324 = vpop.f32.mrb[0].mxu0
        %v325 = vadd.f32 0.0, %v324
        %v326 = vpop.f32.mrb[0].mxu0
        %327 = vdwg.mxu0
        %v328 = vmul.f32 %v254, 0.0078125
        %v329 = vmul.f32 %v254, %v328
        %v330 = vsub.f32 %v325, %v329
        %v331 = vmul.f32 %v330, 0.007874016
        %v332 = vmax.f32 %v331, 0.0
        %v333 = vadd.f32 %v332, 1e-05
        %v334 = vrsqrt.pop %v333
        %336 = vset.pattern.permute.xlu0 0
        %337 = vperm.xlu0 %336, %v328
        %v338 = vpop.permute.xlu0 %337
        %v340 = vsub.f32 %v186, %v338
        %342 = vset.pattern.permute.xlu0 0
        %343 = vperm.xlu0 %342, %v334
        %v344 = vpop.permute.xlu0 %343
        %v346 = vmul.f32 %v340, %v344
        %v347 = vld [vmem:[%s1] sm:$0x1]
        %v349 = vlaneseq
        %v350 = vshrl.u32 %v349, 7
        %v351 = vsub.s32 0, %v350
        %v352 = vrot.slane %v347, %v351
        %v354 = vmul.f32 %v346, %v352
        %v355 = vld [vmem:[%s2] sm:$0x1]
        %v357 = vlaneseq
        %v358 = vshrl.u32 %v357, 7
        %v359 = vsub.s32 0, %v358
        %v360 = vrot.slane %v355, %v359
        %v362 = vadd.f32 %v354, %v360
        %363 = vst [vmem:[%s185] sm:$0xff] %v362
        %s364 = sand.u32 %s96, 1
        %s365 = scalar_lea.sflag [#allocation4], %s364
        %s366 = sand.u32 %s96, 1
        %s367 = smul.addr %s366, 8
        %s368 = scalar_lea.vmem [#allocation5], %s367
        // Predicated region
        $region37: #{tpu_custom_call.1} parent=31 // pred_check
          %p369 = pneg %p106
        $region38: #{tpu_custom_call.1} parent=31 // pred_check_branch
          %371 = sbr.rel (%p369) target = $region40
        $region39: #{tpu_custom_call.1} parent=31 // pred_region
          %s373 = ssub.s32 128, 128
          %374 = vsyncadd %s365, %s373
          %s375 = smul.addr %s20, 128
          %s376 = scalar_lea.hbm %s3, %s375
          %s378 = sshll.u32 %s368, 4
          %s379 = int_to_ptr.vmem [resolvable:$true] %s378
          %381 = dma.vmem_to_hbm [thread:$0]  %s379, 128, %s376, %s365
        $region40: #{tpu_custom_call.1} parent=31 // pred_fallthru
          _
      $region32: #{tpu_custom_call.1} parent=5 // pred_fallthru
        _
      %p382 = scmp.le.s32.totalorder 2, %s15
      // Predicated region
      $region41: #{tpu_custom_call.1} parent=5 // pred_check
        %p383 = pneg %p382
      $region42: #{tpu_custom_call.1} parent=5 // pred_check_branch
        %385 = sbr.rel (%p383) target = $region44
      $region43: #{tpu_custom_call.1} parent=5 // pred_region
        %s386 = ssub.s32 %s15, 2
        // Predicated region
        $region45: #{tpu_custom_call.1} parent=43 // pred_check
          %p387 = pneg %p112
        $region46: #{tpu_custom_call.1} parent=43 // pred_check_branch
          %389 = sbr.rel (%p387) target = $region48
        $region47: #{tpu_custom_call.1} parent=43 // pred_region
          %s390 = sand.u32 %s97, 1
          %s391 = scalar_lea.sflag [#allocation4], %s390
          %s392 = sand.u32 %s97, 1
          %s393 = smul.addr %s392, 8
          %s394 = scalar_lea.vmem [#allocation5], %s393
          %395 = dma.done %s391, 128
        $region48: #{tpu_custom_call.1} parent=43 // pred_fallthru
          _
      $region44: #{tpu_custom_call.1} parent=5 // pred_fallthru
        _
    $region6: #{tpu_custom_call.1} parent=1 // loop_footer
      %s19 = sadd.s32 1, %s15
    $region7: #{tpu_custom_call.1} parent=1 // loop_footer_branch
      %14 = sbr.rel target = $region3
    $region8: #{tpu_custom_call.1} parent=1 // loop_exit
      _
    %396 = vsyncpa [#allocation3], 1
    %s397 = scalar_lea.sflag [#allocation3], 1
    %398 = vsyncpa %s397, 1
    %399 = vsyncpa [#allocation4], 1
    %s400 = scalar_lea.sflag [#allocation4], 1
    %401 = vsyncpa %s400, 1

</llo_original>
